<compile_context>
chip_gen: v6e
topology: v6e:2x2x1
jax: 0.10.0
libtpu: 0.0.40
codegen_flags: <defaults>
</compile_context>

<pallas_src>
import functools

import jax
import jax.numpy as jnp
from jax.experimental import pallas as pl
from jax.experimental.pallas import tpu as pltpu

_LANE = 128                    # lane width; feature dims padded to this multiple
_SUBLANE = 8                   # sublane width; row tiles padded to this multiple
_COMPUTE_DTYPE = jnp.bfloat16  # MXU input dtype (f32 accumulation)


def _round_up(v, m):
    return (v + m - 1) // m * m


def _pad2(a, rows, cols):
    r, c = a.shape
    return jnp.pad(a, ((0, rows - r), (0, cols - c)))


def _default_vmem_limit_bytes():
    # ~75% of physical VMEM: ~96 MiB on v5e/v6e (128 MiB), ~48 MiB on v7x (64 MiB).
    try:
        cap = int(pltpu.get_tpu_info().vmem_capacity_bytes)
    except Exception:
        cap = 64 * 1024 * 1024  # conservative fallback
    return cap * 3 // 4


def _projector_kernel(x_ref,
                      w_in_ref, b_in_ref,
                      w_h0_ref, b_h0_ref,
                      w_h1_ref, b_h1_ref,
                      w_out_ref, b_out_ref,
                      o_ref):
    """Fused 4-matmul MLP on one row-tile of x (bf16 MXU, f32 accumulation)."""
    cdt = w_in_ref.dtype  # compute dtype (bf16); x_ref is already this dtype

    # inp_layer
    h = jnp.dot(x_ref[...], w_in_ref[...], preferred_element_type=jnp.float32)
    h = h + b_in_ref[...]

    # hidden layer 0  (dropout is identity in eval mode)
    h = jnp.dot(h.astype(cdt), w_h0_ref[...], preferred_element_type=jnp.float32)
    h = h + b_h0_ref[...]

    # hidden layer 1
    h = jnp.dot(h.astype(cdt), w_h1_ref[...], preferred_element_type=jnp.float32)
    h = h + b_h1_ref[...]

    # out_layer
    h = jnp.dot(h.astype(cdt), w_out_ref[...], preferred_element_type=jnp.float32)
    h = h + b_out_ref[...]

    o_ref[...] = h.astype(o_ref.dtype)


@functools.partial(jax.jit, static_argnames=("tile_m",))
def _projector_forward_2d(x, params, tile_m=256):
    """x: [M, in_features] float32. params: dict of f32 weights/biases.

    Weights are stored as [in_dim, out_dim] (transpose of PyTorch nn.Linear)
    so the kernel computes y = x @ W + b directly on the MXU.
    """
    m, in_features = x.shape
    out_features = params["w_in"].shape[1]

    # Lane-dense padding of feature dims; row padding to the tile size.
    k_pad = _round_up(in_features, _LANE)
    n_pad = _round_up(out_features, _LANE)
    # Cap tile_m at the (sublane-aligned) row count so tiny demo inputs don't
    # pay for hundreds of rows of zero padding; real workloads (M >= 256) use
    # the full 256-row tile and M/tile_m >= 2 keeps both v7x cores busy.
    tile_m = max(_SUBLANE, min(tile_m, _round_up(m, _SUBLANE)))
    m_pad = _round_up(m, tile_m)

    cdt = _COMPUTE_DTYPE
    xp = _pad2(x, m_pad, k_pad).astype(cdt)
    w_in = _pad2(params["w_in"], k_pad, n_pad).astype(cdt)
    w_h0 = _pad2(params["w_h0"], n_pad, n_pad).astype(cdt)
    w_h1 = _pad2(params["w_h1"], n_pad, n_pad).astype(cdt)
    w_out = _pad2(params["w_out"], n_pad, n_pad).astype(cdt)
    b_in = _pad2(params["b_in"], 1, n_pad)     # biases stay f32 (f32 bias add)
    b_h0 = _pad2(params["b_h0"], 1, n_pad)
    b_h1 = _pad2(params["b_h1"], 1, n_pad)
    b_out = _pad2(params["b_out"], 1, n_pad)

    grid = (m_pad // tile_m,)

    def full(shape):
        return pl.BlockSpec(shape, lambda i: (0,) * len(shape))

    itm = jnp.dtype(cdt).itemsize
    flops = 2 * m_pad * (k_pad * n_pad + 3 * n_pad * n_pad)
    bytes_accessed = (m_pad * k_pad * itm                          # x (bf16)
                      + (k_pad * n_pad + 3 * n_pad * n_pad) * itm  # weights
                      + 4 * n_pad * 4                              # biases (f32)
                      + m_pad * n_pad * 4)                         # output (f32)

    out = pl.pallas_call(
        _projector_kernel,
        out_shape=jax.ShapeDtypeStruct((m_pad, n_pad), jnp.float32),
        grid_spec=pltpu.PrefetchScalarGridSpec(
            num_scalar_prefetch=0,
            grid=grid,
            in_specs=[
                pl.BlockSpec((tile_m, k_pad), lambda i: (i, 0)),   # x row tile
                full((k_pad, n_pad)),                              # w_in
                full((1, n_pad)),                                  # b_in
                full((n_pad, n_pad)),                              # w_h0
                full((1, n_pad)),                                  # b_h0
                full((n_pad, n_pad)),                              # w_h1
                full((1, n_pad)),                                  # b_h1
                full((n_pad, n_pad)),                              # w_out
                full((1, n_pad)),                                  # b_out
            ],
            out_specs=pl.BlockSpec((tile_m, n_pad), lambda i: (i, 0)),
        ),
        compiler_params=pltpu.CompilerParams(
            dimension_semantics=("parallel",),
            vmem_limit_bytes=_default_vmem_limit_bytes()),
        cost_estimate=pl.CostEstimate(
            flops=flops, transcendentals=0, bytes_accessed=bytes_accessed),
    )(
        xp,
        w_in, b_in, w_h0, b_h0, w_h1, b_h1, w_out, b_out,
    )
    # Strip row / feature padding.
    return out[:m, :out_features]


def projector_forward(x, params, tile_m=256):
    """Accepts [..., in_features]; flattens leading dims, runs the fused kernel,
    and restores the original leading shape (matches the PyTorch module)."""
    lead = x.shape[:-1]
    in_features = x.shape[-1]
    out_features = params["w_in"].shape[1]
    x2 = x.reshape(-1, in_features)
    y2 = _projector_forward_2d(x2, params, tile_m=tile_m)
    return y2.reshape(*lead, out_features)


def init_projector_params(key, in_features, out_features):
    """Deterministic init mimicking nn.Linear's U(-1/sqrt(fan_in), 1/sqrt(fan_in)).
    Weights stored as [in_dim, out_dim] (transpose of PyTorch layout)."""
    keys = jax.random.split(key, 8)

    def linear(kw, kb, fan_in, fan_out):
        bound = 1.0 / jnp.sqrt(jnp.float32(fan_in))
        w = jax.random.uniform(kw, (fan_in, fan_out), jnp.float32, -bound, bound)
        b = jax.random.uniform(kb, (1, fan_out), jnp.float32, -bound, bound)
        return w, b

    w_in, b_in = linear(keys[0], keys[1], in_features, out_features)
    w_h0, b_h0 = linear(keys[2], keys[3], out_features, out_features)
    w_h1, b_h1 = linear(keys[4], keys[5], out_features, out_features)
    w_out, b_out = linear(keys[6], keys[7], out_features, out_features)
    return dict(w_in=w_in, b_in=b_in, w_h0=w_h0, b_h0=b_h0,
                w_h1=w_h1, b_h1=b_h1, w_out=w_out, b_out=b_out)


def projector_reference(x, p):
    """Pure-JAX reference with the same bf16-input / f32-accumulation math."""
    c = _COMPUTE_DTYPE

    def lin(h, w, b):
        return jnp.dot(h.astype(c), w.astype(c),
                       preferred_element_type=jnp.float32) + b

    h = lin(x, p["w_in"], p["b_in"])
    h = lin(h, p["w_h0"], p["b_h0"])   # dropout = identity (eval mode)
    h = lin(h, p["w_h1"], p["b_h1"])
    h = lin(h, p["w_out"], p["b_out"])
    return h


if __name__ == "__main__":
    key = jax.random.PRNGKey(0)
    k_x, k_p = jax.random.split(key)

    batch, seq = 2, 8
    in_features, out_features = 32, 64

    # Input embeddings: [batch, seq, in_features].
    x3 = jax.random.normal(k_x, (batch, seq, in_features), jnp.float32)
    params = init_projector_params(k_p, in_features, out_features)

    out = projector_forward(x3, params)
    out = jax.block_until_ready(out)
    assert out.shape == (batch, seq, out_features)

    # Correctness check against a pure-JAX reference using the same bf16 math.
    ref = projector_reference(x3.reshape(batch * seq, in_features), params)
    ref = ref.reshape(batch, seq, out_features)
    assert jnp.allclose(out, ref, atol=1e-2, rtol=1e-2), "mismatch vs reference"

    print("KERNEL_OK")
</pallas_src>

<mosaic_0001>
module attributes {stable_mosaic.version = 11 : i64} {
  func.func @_projector_kernel(%arg0: i32, %arg1: memref<16x128xbf16, #tpu.memory_space<vmem>>, %arg2: memref<128x128xbf16, #tpu.memory_space<vmem>>, %arg3: memref<1x128xf32, #tpu.memory_space<vmem>>, %arg4: memref<128x128xbf16, #tpu.memory_space<vmem>>, %arg5: memref<1x128xf32, #tpu.memory_space<vmem>>, %arg6: memref<128x128xbf16, #tpu.memory_space<vmem>>, %arg7: memref<1x128xf32, #tpu.memory_space<vmem>>, %arg8: memref<128x128xbf16, #tpu.memory_space<vmem>>, %arg9: memref<1x128xf32, #tpu.memory_space<vmem>>, %arg10: memref<16x128xf32, #tpu.memory_space<vmem>>) attributes {dimension_semantics = [#tpu.dimension_semantics<parallel>], iteration_bounds = array<i64: 1>, scalar_prefetch = 0 : i64, scratch_operands = 0 : i64, tpu.core_type = #tpu.core_type<tc>, window_params = [{transform_indices = @transform_0, window_bounds = array<i64: 16, 128>}, {pipeline_mode = #tpu.pipeline_mode<synchronous>, transform_indices = @transform_1, window_bounds = array<i64: 128, 128>}, {pipeline_mode = #tpu.pipeline_mode<synchronous>, transform_indices = @transform_2, window_bounds = array<i64: 1, 128>}, {pipeline_mode = #tpu.pipeline_mode<synchronous>, transform_indices = @transform_3, window_bounds = array<i64: 128, 128>}, {pipeline_mode = #tpu.pipeline_mode<synchronous>, transform_indices = @transform_4, window_bounds = array<i64: 1, 128>}, {pipeline_mode = #tpu.pipeline_mode<synchronous>, transform_indices = @transform_5, window_bounds = array<i64: 128, 128>}, {pipeline_mode = #tpu.pipeline_mode<synchronous>, transform_indices = @transform_6, window_bounds = array<i64: 1, 128>}, {pipeline_mode = #tpu.pipeline_mode<synchronous>, transform_indices = @transform_7, window_bounds = array<i64: 128, 128>}, {pipeline_mode = #tpu.pipeline_mode<synchronous>, transform_indices = @transform_8, window_bounds = array<i64: 1, 128>}, {transform_indices = @transform_9, window_bounds = array<i64: 16, 128>}]} {
    %c0 = arith.constant 0 : index
    %c0_0 = arith.constant 0 : index
    %0 = vector.load %arg1[%c0, %c0_0] : memref<16x128xbf16, #tpu.memory_space<vmem>>, vector<16x128xbf16>
    %c0_1 = arith.constant 0 : index
    %c0_2 = arith.constant 0 : index
    %1 = vector.load %arg2[%c0_1, %c0_2] : memref<128x128xbf16, #tpu.memory_space<vmem>>, vector<128x128xbf16>
    %cst = arith.constant dense<0.000000e+00> : vector<16x128xf32>
    %2 = tpu.matmul %0, %1, %cst {dimension_numbers = #tpu.dot_dimension_numbers<[1], [0], [0], [1], [0, 0, 1, 1], [], []>} : vector<16x128xbf16>, vector<128x128xbf16>, vector<16x128xf32> -> vector<16x128xf32>
    %c0_3 = arith.constant 0 : index
    %c0_4 = arith.constant 0 : index
    %3 = vector.load %arg3[%c0_3, %c0_4] : memref<1x128xf32, #tpu.memory_space<vmem>>, vector<1x128xf32>
    %4 = vector.broadcast %3 : vector<1x128xf32> to vector<16x128xf32>
    %5 = arith.addf %2, %4 : vector<16x128xf32>
    %6 = arith.truncf %5 : vector<16x128xf32> to vector<16x128xbf16>
    %c0_5 = arith.constant 0 : index
    %c0_6 = arith.constant 0 : index
    %7 = vector.load %arg4[%c0_5, %c0_6] : memref<128x128xbf16, #tpu.memory_space<vmem>>, vector<128x128xbf16>
    %cst_7 = arith.constant dense<0.000000e+00> : vector<16x128xf32>
    %8 = tpu.matmul %6, %7, %cst_7 {dimension_numbers = #tpu.dot_dimension_numbers<[1], [0], [0], [1], [0, 0, 1, 1], [], []>} : vector<16x128xbf16>, vector<128x128xbf16>, vector<16x128xf32> -> vector<16x128xf32>
    %c0_8 = arith.constant 0 : index
    %c0_9 = arith.constant 0 : index
    %9 = vector.load %arg5[%c0_8, %c0_9] : memref<1x128xf32, #tpu.memory_space<vmem>>, vector<1x128xf32>
    %10 = vector.broadcast %9 : vector<1x128xf32> to vector<16x128xf32>
    %11 = arith.addf %8, %10 : vector<16x128xf32>
    %12 = arith.truncf %11 : vector<16x128xf32> to vector<16x128xbf16>
    %c0_10 = arith.constant 0 : index
    %c0_11 = arith.constant 0 : index
    %13 = vector.load %arg6[%c0_10, %c0_11] : memref<128x128xbf16, #tpu.memory_space<vmem>>, vector<128x128xbf16>
    %cst_12 = arith.constant dense<0.000000e+00> : vector<16x128xf32>
    %14 = tpu.matmul %12, %13, %cst_12 {dimension_numbers = #tpu.dot_dimension_numbers<[1], [0], [0], [1], [0, 0, 1, 1], [], []>} : vector<16x128xbf16>, vector<128x128xbf16>, vector<16x128xf32> -> vector<16x128xf32>
    %c0_13 = arith.constant 0 : index
    %c0_14 = arith.constant 0 : index
    %15 = vector.load %arg7[%c0_13, %c0_14] : memref<1x128xf32, #tpu.memory_space<vmem>>, vector<1x128xf32>
    %16 = vector.broadcast %15 : vector<1x128xf32> to vector<16x128xf32>
    %17 = arith.addf %14, %16 : vector<16x128xf32>
    %18 = arith.truncf %17 : vector<16x128xf32> to vector<16x128xbf16>
    %c0_15 = arith.constant 0 : index
    %c0_16 = arith.constant 0 : index
    %19 = vector.load %arg8[%c0_15, %c0_16] : memref<128x128xbf16, #tpu.memory_space<vmem>>, vector<128x128xbf16>
    %cst_17 = arith.constant dense<0.000000e+00> : vector<16x128xf32>
    %20 = tpu.matmul %18, %19, %cst_17 {dimension_numbers = #tpu.dot_dimension_numbers<[1], [0], [0], [1], [0, 0, 1, 1], [], []>} : vector<16x128xbf16>, vector<128x128xbf16>, vector<16x128xf32> -> vector<16x128xf32>
    %c0_18 = arith.constant 0 : index
    %c0_19 = arith.constant 0 : index
    %21 = vector.load %arg9[%c0_18, %c0_19] : memref<1x128xf32, #tpu.memory_space<vmem>>, vector<1x128xf32>
    %22 = vector.broadcast %21 : vector<1x128xf32> to vector<16x128xf32>
    %23 = arith.addf %20, %22 : vector<16x128xf32>
    %c0_20 = arith.constant 0 : index
    %c0_21 = arith.constant 0 : index
    %24 = vector.load %arg10[%c0_20, %c0_21] : memref<16x128xf32, #tpu.memory_space<vmem>>, vector<16x128xf32>
    tpu.vector_store %arg10[%c0_20, %c0_21], %23 {strides = array<i32>} : memref<16x128xf32, #tpu.memory_space<vmem>>, vector<16x128xf32>,
    return
  }
  func.func @transform_0(%arg0: i32) -> (i32, i32) {
    %c0_i32 = arith.constant 0 : i32
    %c0_i32_0 = arith.constant 0 : i32
    return %arg0, %c0_i32 : i32, i32
  }
  func.func @transform_1(%arg0: i32) -> (i32, i32) {
    %c0_i32 = arith.constant 0 : i32
    %c0_i32_0 = arith.constant 0 : i32
    %c0_i32_1 = arith.constant 0 : i32
    return %c0_i32, %c0_i32_0 : i32, i32
  }
  func.func @transform_2(%arg0: i32) -> (i32, i32) {
    %c0_i32 = arith.constant 0 : i32
    %c0_i32_0 = arith.constant 0 : i32
    %c0_i32_1 = arith.constant 0 : i32
    return %c0_i32, %c0_i32_0 : i32, i32
  }
  func.func @transform_3(%arg0: i32) -> (i32, i32) {
    %c0_i32 = arith.constant 0 : i32
    %c0_i32_0 = arith.constant 0 : i32
    %c0_i32_1 = arith.constant 0 : i32
    return %c0_i32, %c0_i32_0 : i32, i32
  }
  func.func @transform_4(%arg0: i32) -> (i32, i32) {
    %c0_i32 = arith.constant 0 : i32
    %c0_i32_0 = arith.constant 0 : i32
    %c0_i32_1 = arith.constant 0 : i32
    return %c0_i32, %c0_i32_0 : i32, i32
  }
  func.func @transform_5(%arg0: i32) -> (i32, i32) {
    %c0_i32 = arith.constant 0 : i32
    %c0_i32_0 = arith.constant 0 : i32
    %c0_i32_1 = arith.constant 0 : i32
    return %c0_i32, %c0_i32_0 : i32, i32
  }
  func.func @transform_6(%arg0: i32) -> (i32, i32) {
    %c0_i32 = arith.constant 0 : i32
    %c0_i32_0 = arith.constant 0 : i32
    %c0_i32_1 = arith.constant 0 : i32
    return %c0_i32, %c0_i32_0 : i32, i32
  }
  func.func @transform_7(%arg0: i32) -> (i32, i32) {
    %c0_i32 = arith.constant 0 : i32
    %c0_i32_0 = arith.constant 0 : i32
    %c0_i32_1 = arith.constant 0 : i32
    return %c0_i32, %c0_i32_0 : i32, i32
  }
  func.func @transform_8(%arg0: i32) -> (i32, i32) {
    %c0_i32 = arith.constant 0 : i32
    %c0_i32_0 = arith.constant 0 : i32
    %c0_i32_1 = arith.constant 0 : i32
    return %c0_i32, %c0_i32_0 : i32, i32
  }
  func.func @transform_9(%arg0: i32) -> (i32, i32) {
    %c0_i32 = arith.constant 0 : i32
    %c0_i32_0 = arith.constant 0 : i32
    return %arg0, %c0_i32 : i32, i32
  }
}

</mosaic_0001>

<llo_original>
// kernel: _projector_forward_2d.1
$region0: #{_projector_forward_2d.1}
  #allocation0 [shape = 'u32[]', space=smem, size = 0x4, offset = 0x4, fixed_abs, tag = 'smem constant byte address 0x4 - core index']
  #allocation1 [shape = 'u32[144,128]{1,0:T(1,128)}', space=vmem, size = 0x12000, scoped, tag = 'internal scratch']
  %s0 = inlined_call_operand.vmem [shape: bf16[16,128], index: 0, kind: input, shape index: {}]
  %s1 = inlined_call_operand.vmem [shape: bf16[128,128], index: 1, kind: input, shape index: {}]
  %s2 = inlined_call_operand.vmem [shape: f32[1,128], index: 2, kind: input, shape index: {}]
  %s3 = inlined_call_operand.vmem [shape: bf16[128,128], index: 3, kind: input, shape index: {}]
  %s4 = inlined_call_operand.vmem [shape: f32[1,128], index: 4, kind: input, shape index: {}]
  %s5 = inlined_call_operand.vmem [shape: bf16[128,128], index: 5, kind: input, shape index: {}]
  %s6 = inlined_call_operand.vmem [shape: f32[1,128], index: 6, kind: input, shape index: {}]
  %s7 = inlined_call_operand.vmem [shape: bf16[128,128], index: 7, kind: input, shape index: {}]
  %s8 = inlined_call_operand.vmem [shape: f32[1,128], index: 8, kind: input, shape index: {}]
  %s9 = inlined_call_operand.hbm [shape: f32[16,128], index: 9, kind: output, shape index: {}]
  %s10 = sld [smem:[#allocation0]]
  $region46: #{_projector_forward_2d.1} parent=0
    _
  %s12 = ssub.s32 1, %s10
  %s13 = scalar_select 0, %s12, %s10
  $region1: #{_projector_forward_2d.1} parent=0
    #allocation2 [shape = 'u8[8192]{0}', space=vmem, size = 0x2000, scoped, tag = 'output window, operand 0, single buffered']
    #allocation3 [shape = 's32[1]{0}', space=sflag, size = 0x4, scoped, tag = 'scoped memory for _projector_forward_2d.1']
    %14 = vsyncpa [#allocation3], 0
    // Predicated region
    $region2: #{_projector_forward_2d.1} parent=1 // pred_check
      _
    $region3: #{_projector_forward_2d.1} parent=1 // pred_check_branch
      %16 = sbr.rel (0) target = $region5
    $region4: #{_projector_forward_2d.1} parent=1 // pred_region
      _
    $region5: #{_projector_forward_2d.1} parent=1 // pred_fallthru
      _
    // Predicated region
    $region6: #{_projector_forward_2d.1} parent=1 // pred_check
      _
    $region7: #{_projector_forward_2d.1} parent=1 // pred_check_branch
      %18 = sbr.rel (0) target = $region9
    $region8: #{_projector_forward_2d.1} parent=1 // pred_region
      _
    $region9: #{_projector_forward_2d.1} parent=1 // pred_fallthru
      _
    // Predicated region
    $region10: #{_projector_forward_2d.1} parent=1 // pred_check
      _
    $region11: #{_projector_forward_2d.1} parent=1 // pred_check_branch
      %20 = sbr.rel (0) target = $region13
    $region12: #{_projector_forward_2d.1} parent=1 // pred_region
      _
    $region13: #{_projector_forward_2d.1} parent=1 // pred_fallthru
      _
    // Predicated region
    $region14: #{_projector_forward_2d.1} parent=1 // pred_check
      _
    $region15: #{_projector_forward_2d.1} parent=1 // pred_check_branch
      %22 = sbr.rel (0) target = $region17
    $region16: #{_projector_forward_2d.1} parent=1 // pred_region
      _
    $region17: #{_projector_forward_2d.1} parent=1 // pred_fallthru
      _
    // Predicated region
    $region18: #{_projector_forward_2d.1} parent=1 // pred_check
      _
    $region19: #{_projector_forward_2d.1} parent=1 // pred_check_branch
      %24 = sbr.rel (0) target = $region21
    $region20: #{_projector_forward_2d.1} parent=1 // pred_region
      _
    $region21: #{_projector_forward_2d.1} parent=1 // pred_fallthru
      _
    // Predicated region
    $region22: #{_projector_forward_2d.1} parent=1 // pred_check
      _
    $region23: #{_projector_forward_2d.1} parent=1 // pred_check_branch
      %26 = sbr.rel (0) target = $region25
    $region24: #{_projector_forward_2d.1} parent=1 // pred_region
      _
    $region25: #{_projector_forward_2d.1} parent=1 // pred_fallthru
      _
    // Predicated region
    $region26: #{_projector_forward_2d.1} parent=1 // pred_check
      _
    $region27: #{_projector_forward_2d.1} parent=1 // pred_check_branch
      %28 = sbr.rel (0) target = $region29
    $region28: #{_projector_forward_2d.1} parent=1 // pred_region
      _
    $region29: #{_projector_forward_2d.1} parent=1 // pred_fallthru
      _
    // Predicated region
    $region30: #{_projector_forward_2d.1} parent=1 // pred_check
      _
    $region31: #{_projector_forward_2d.1} parent=1 // pred_check_branch
      %30 = sbr.rel (0) target = $region33
    $region32: #{_projector_forward_2d.1} parent=1 // pred_region
      _
    $region33: #{_projector_forward_2d.1} parent=1 // pred_fallthru
      _
    // Predicated region
    $region34: #{_projector_forward_2d.1} parent=1 // pred_check
      _
    $region35: #{_projector_forward_2d.1} parent=1 // pred_check_branch
      %32 = sbr.rel (0) target = $region37
    $region36: #{_projector_forward_2d.1} parent=1 // pred_region
      _
    $region37: #{_projector_forward_2d.1} parent=1 // pred_fallthru
      _
    %v34 = vld [vmem:[%s0] sm:$0xf]
    %v35 = vld [vmem:[%s0 + $0x4] sm:$0xf]
    %v36 = vld [vmem:[%s1] sm:$0xf]
    %v37 = vld [vmem:[%s1 + $0x4] sm:$0xf]
    %v38 = vld [vmem:[%s1 + $0x8] sm:$0xf]
    %v39 = vld [vmem:[%s1 + $0xc] sm:$0xf]
    %v40 = vld [vmem:[%s1 + $0x10] sm:$0xf]
    %v41 = vld [vmem:[%s1 + $0x14] sm:$0xf]
    %v42 = vld [vmem:[%s1 + $0x18] sm:$0xf]
    %v43 = vld [vmem:[%s1 + $0x1c] sm:$0xf]
    %v44 = vld [vmem:[%s1 + $0x20] sm:$0xf]
    %v45 = vld [vmem:[%s1 + $0x24] sm:$0xf]
    %v46 = vld [vmem:[%s1 + $0x28] sm:$0xf]
    %v47 = vld [vmem:[%s1 + $0x2c] sm:$0xf]
    %v48 = vld [vmem:[%s1 + $0x30] sm:$0xf]
    %v49 = vld [vmem:[%s1 + $0x34] sm:$0xf]
    %v50 = vld [vmem:[%s1 + $0x38] sm:$0xf]
    %v51 = vld [vmem:[%s1 + $0x3c] sm:$0xf]
    %v52 = vld [vmem:[%s2] sm:$0x1]
    %v54 = vlaneseq
    %v55 = vshrl.u32 %v54, 7
    %v56 = vsub.s32 0, %v55
    %v57 = vrot.slane %v52, %v56
    %v61 = vunpack.c.l.b16 %v34
    %v62 = vunpack.c.l.b16 %v35
    %v63 = vpack.c.b16 %v62, %v61
    %v81 = vunpack.c.l.b16 %v36
    %v82 = vunpack.c.l.b16 %v37
    %v83 = vunpack.c.l.b16 %v38
    %v84 = vunpack.c.l.b16 %v39
    %v85 = vunpack.c.l.b16 %v40
    %v86 = vunpack.c.l.b16 %v41
    %v87 = vunpack.c.l.b16 %v42
    %v88 = vunpack.c.l.b16 %v43
    %v89 = vunpack.c.l.b16 %v44
    %v90 = vunpack.c.l.b16 %v45
    %v91 = vunpack.c.l.b16 %v46
    %v92 = vunpack.c.l.b16 %v47
    %v93 = vunpack.c.l.b16 %v48
    %v94 = vunpack.c.l.b16 %v49
    %v95 = vunpack.c.l.b16 %v50
    %v96 = vunpack.c.l.b16 %v51
    %v97 = vpack.c.b16 %v82, %v81
    %v98 = vpack.c.b16 %v84, %v83
    %v99 = vpack.c.b16 %v86, %v85
    %v100 = vpack.c.b16 %v88, %v87
    %v101 = vpack.c.b16 %v90, %v89
    %v102 = vpack.c.b16 %v92, %v91
    %v103 = vpack.c.b16 %v94, %v93
    %v104 = vpack.c.b16 %v96, %v95
    %113 = vmatprep.subr.bf16.mxu0 0
    %114 = vmatpush1.bf16.msra.mxu0 %v104
    %115 = vmatprep.subr.bf16.mxu0 0
    %116 = vmatpush1.bf16.msra.mxu0 %v103
    %117 = vmatprep.subr.bf16.mxu0 0
    %118 = vmatpush1.bf16.msra.mxu0 %v102
    %119 = vmatprep.subr.bf16.mxu0 0
    %120 = vmatpush1.bf16.msra.mxu0 %v101
    %121 = vmatprep.subr.bf16.mxu0 0
    %122 = vmatpush1.bf16.msra.mxu0 %v100
    %123 = vmatprep.subr.bf16.mxu0 0
    %124 = vmatpush1.bf16.msra.mxu0 %v99
    %125 = vmatprep.subr.bf16.mxu0 0
    %126 = vmatpush1.bf16.msra.mxu0 %v98
    %127 = vmatprep.subr.bf16.mxu0 0
    %128 = vmatpush1.bf16.msra.mxu0 %v97
    %129 = vmatprep.subr.bf16.mxu0 0
    %130 = vmatpush2.bf16.msra.mxu0 0
    %131 = vmatprep.subr.bf16.mxu0 0
    %132 = vmatpush2.bf16.msra.mxu0 0
    %133 = vmatprep.subr.bf16.mxu0 0
    %134 = vmatpush2.bf16.msra.mxu0 0
    %135 = vmatprep.subr.bf16.mxu0 0
    %136 = vmatpush2.bf16.msra.mxu0 0
    %137 = vmatprep.subr.bf16.mxu0 0
    %138 = vmatpush2.bf16.msra.mxu0 0
    %139 = vmatprep.subr.bf16.mxu0 0
    %140 = vmatpush2.bf16.msra.mxu0 0
    %141 = vmatprep.subr.bf16.mxu0 0
    %142 = vmatpush2.bf16.msra.mxu0 0
    %143 = vmatprep.subr.bf16.mxu0 0
    %144 = vmatpush2.bf16.msra.mxu0 0
    %145 = vmatprep.mubr.bf16.mxu0 0
    %146 = vmatmul.mubr.bf16.gmra.mxu0 %v63
    %v147 = vpop.f32.mrf.mxu0
    %v148 = vadd.f32 %v57, %v147
    %v149 = vpop.f32.mrf.mxu0
    %v150 = vpop.f32.mrf.mxu0
    %v151 = vadd.f32 %v57, %v150
    %v152 = vpop.f32.mrf.mxu0
    %153 = vdwg.mxu0
    %v154 = vpack.c.bf16 %v151, %v148
    %v155 = vld [vmem:[%s3] sm:$0xf]
    %v156 = vld [vmem:[%s3 + $0x4] sm:$0xf]
    %v157 = vld [vmem:[%s3 + $0x8] sm:$0xf]
    %v158 = vld [vmem:[%s3 + $0xc] sm:$0xf]
    %v159 = vld [vmem:[%s3 + $0x10] sm:$0xf]
    %v160 = vld [vmem:[%s3 + $0x14] sm:$0xf]
    %v161 = vld [vmem:[%s3 + $0x18] sm:$0xf]
    %v162 = vld [vmem:[%s3 + $0x1c] sm:$0xf]
    %v163 = vld [vmem:[%s3 + $0x20] sm:$0xf]
    %v164 = vld [vmem:[%s3 + $0x24] sm:$0xf]
    %v165 = vld [vmem:[%s3 + $0x28] sm:$0xf]
    %v166 = vld [vmem:[%s3 + $0x2c] sm:$0xf]
    %v167 = vld [vmem:[%s3 + $0x30] sm:$0xf]
    %v168 = vld [vmem:[%s3 + $0x34] sm:$0xf]
    %v169 = vld [vmem:[%s3 + $0x38] sm:$0xf]
    %v170 = vld [vmem:[%s3 + $0x3c] sm:$0xf]
    %v171 = vld [vmem:[%s4] sm:$0x1]
    %v173 = vlaneseq
    %v174 = vshrl.u32 %v173, 7
    %v175 = vsub.s32 0, %v174
    %v176 = vrot.slane %v171, %v175
    %v194 = vunpack.c.l.b16 %v155
    %v195 = vunpack.c.l.b16 %v156
    %v196 = vunpack.c.l.b16 %v157
    %v197 = vunpack.c.l.b16 %v158
    %v198 = vunpack.c.l.b16 %v159
    %v199 = vunpack.c.l.b16 %v160
    %v200 = vunpack.c.l.b16 %v161
    %v201 = vunpack.c.l.b16 %v162
    %v202 = vunpack.c.l.b16 %v163
    %v203 = vunpack.c.l.b16 %v164
    %v204 = vunpack.c.l.b16 %v165
    %v205 = vunpack.c.l.b16 %v166
    %v206 = vunpack.c.l.b16 %v167
    %v207 = vunpack.c.l.b16 %v168
    %v208 = vunpack.c.l.b16 %v169
    %v209 = vunpack.c.l.b16 %v170
    %v210 = vpack.c.b16 %v195, %v194
    %v211 = vpack.c.b16 %v197, %v196
    %v212 = vpack.c.b16 %v199, %v198
    %v213 = vpack.c.b16 %v201, %v200
    %v214 = vpack.c.b16 %v203, %v202
    %v215 = vpack.c.b16 %v205, %v204
    %v216 = vpack.c.b16 %v207, %v206
    %v217 = vpack.c.b16 %v209, %v208
    %226 = vmatprep.subr.bf16.mxu0 0
    %227 = vmatpush1.bf16.msra.mxu0 %v217
    %228 = vmatprep.subr.bf16.mxu0 0
    %229 = vmatpush1.bf16.msra.mxu0 %v216
    %230 = vmatprep.subr.bf16.mxu0 0
    %231 = vmatpush1.bf16.msra.mxu0 %v215
    %232 = vmatprep.subr.bf16.mxu0 0
    %233 = vmatpush1.bf16.msra.mxu0 %v214
    %234 = vmatprep.subr.bf16.mxu0 0
    %235 = vmatpush1.bf16.msra.mxu0 %v213
    %236 = vmatprep.subr.bf16.mxu0 0
    %237 = vmatpush1.bf16.msra.mxu0 %v212
    %238 = vmatprep.subr.bf16.mxu0 0
    %239 = vmatpush1.bf16.msra.mxu0 %v211
    %240 = vmatprep.subr.bf16.mxu0 0
    %241 = vmatpush1.bf16.msra.mxu0 %v210
    %242 = vmatprep.subr.bf16.mxu0 0
    %243 = vmatpush2.bf16.msra.mxu0 0
    %244 = vmatprep.subr.bf16.mxu0 0
    %245 = vmatpush2.bf16.msra.mxu0 0
    %246 = vmatprep.subr.bf16.mxu0 0
    %247 = vmatpush2.bf16.msra.mxu0 0
    %248 = vmatprep.subr.bf16.mxu0 0
    %249 = vmatpush2.bf16.msra.mxu0 0
    %250 = vmatprep.subr.bf16.mxu0 0
    %251 = vmatpush2.bf16.msra.mxu0 0
    %252 = vmatprep.subr.bf16.mxu0 0
    %253 = vmatpush2.bf16.msra.mxu0 0
    %254 = vmatprep.subr.bf16.mxu0 0
    %255 = vmatpush2.bf16.msra.mxu0 0
    %256 = vmatprep.subr.bf16.mxu0 0
    %257 = vmatpush2.bf16.msra.mxu0 0
    %258 = vmatprep.mubr.bf16.mxu0 0
    %259 = vmatmul.mubr.bf16.gmra.mxu0 %v154
    %v260 = vpop.f32.mrf.mxu0
    %v261 = vadd.f32 %v176, %v260
    %v262 = vpop.f32.mrf.mxu0
    %v263 = vpop.f32.mrf.mxu0
    %v264 = vadd.f32 %v176, %v263
    %v265 = vpop.f32.mrf.mxu0
    %266 = vdwg.mxu0
    %v267 = vpack.c.bf16 %v264, %v261
    %v268 = vld [vmem:[%s5] sm:$0xf]
    %v269 = vld [vmem:[%s5 + $0x4] sm:$0xf]
    %v270 = vld [vmem:[%s5 + $0x8] sm:$0xf]
    %v271 = vld [vmem:[%s5 + $0xc] sm:$0xf]
    %v272 = vld [vmem:[%s5 + $0x10] sm:$0xf]
    %v273 = vld [vmem:[%s5 + $0x14] sm:$0xf]
    %v274 = vld [vmem:[%s5 + $0x18] sm:$0xf]
    %v275 = vld [vmem:[%s5 + $0x1c] sm:$0xf]
    %v276 = vld [vmem:[%s5 + $0x20] sm:$0xf]
    %v277 = vld [vmem:[%s5 + $0x24] sm:$0xf]
    %v278 = vld [vmem:[%s5 + $0x28] sm:$0xf]
    %v279 = vld [vmem:[%s5 + $0x2c] sm:$0xf]
    %v280 = vld [vmem:[%s5 + $0x30] sm:$0xf]
    %v281 = vld [vmem:[%s5 + $0x34] sm:$0xf]
    %v282 = vld [vmem:[%s5 + $0x38] sm:$0xf]
    %v283 = vld [vmem:[%s5 + $0x3c] sm:$0xf]
    %v284 = vld [vmem:[%s6] sm:$0x1]
    %v286 = vlaneseq
    %v287 = vshrl.u32 %v286, 7
    %v288 = vsub.s32 0, %v287
    %v289 = vrot.slane %v284, %v288
    %v307 = vunpack.c.l.b16 %v268
    %v308 = vunpack.c.l.b16 %v269
    %v309 = vunpack.c.l.b16 %v270
    %v310 = vunpack.c.l.b16 %v271
    %v311 = vunpack.c.l.b16 %v272
    %v312 = vunpack.c.l.b16 %v273
    %v313 = vunpack.c.l.b16 %v274
    %v314 = vunpack.c.l.b16 %v275
    %v315 = vunpack.c.l.b16 %v276
    %v316 = vunpack.c.l.b16 %v277
    %v317 = vunpack.c.l.b16 %v278
    %v318 = vunpack.c.l.b16 %v279
    %v319 = vunpack.c.l.b16 %v280
    %v320 = vunpack.c.l.b16 %v281
    %v321 = vunpack.c.l.b16 %v282
    %v322 = vunpack.c.l.b16 %v283
    %v323 = vpack.c.b16 %v308, %v307
    %v324 = vpack.c.b16 %v310, %v309
    %v325 = vpack.c.b16 %v312, %v311
    %v326 = vpack.c.b16 %v314, %v313
    %v327 = vpack.c.b16 %v316, %v315
    %v328 = vpack.c.b16 %v318, %v317
    %v329 = vpack.c.b16 %v320, %v319
    %v330 = vpack.c.b16 %v322, %v321
    %339 = vmatprep.subr.bf16.mxu0 0
    %340 = vmatpush1.bf16.msra.mxu0 %v330
    %341 = vmatprep.subr.bf16.mxu0 0
    %342 = vmatpush1.bf16.msra.mxu0 %v329
    %343 = vmatprep.subr.bf16.mxu0 0
    %344 = vmatpush1.bf16.msra.mxu0 %v328
    %345 = vmatprep.subr.bf16.mxu0 0
    %346 = vmatpush1.bf16.msra.mxu0 %v327
    %347 = vmatprep.subr.bf16.mxu0 0
    %348 = vmatpush1.bf16.msra.mxu0 %v326
    %349 = vmatprep.subr.bf16.mxu0 0
    %350 = vmatpush1.bf16.msra.mxu0 %v325
    %351 = vmatprep.subr.bf16.mxu0 0
    %352 = vmatpush1.bf16.msra.mxu0 %v324
    %353 = vmatprep.subr.bf16.mxu0 0
    %354 = vmatpush1.bf16.msra.mxu0 %v323
    %355 = vmatprep.subr.bf16.mxu0 0
    %356 = vmatpush2.bf16.msra.mxu0 0
    %357 = vmatprep.subr.bf16.mxu0 0
    %358 = vmatpush2.bf16.msra.mxu0 0
    %359 = vmatprep.subr.bf16.mxu0 0
    %360 = vmatpush2.bf16.msra.mxu0 0
    %361 = vmatprep.subr.bf16.mxu0 0
    %362 = vmatpush2.bf16.msra.mxu0 0
    %363 = vmatprep.subr.bf16.mxu0 0
    %364 = vmatpush2.bf16.msra.mxu0 0
    %365 = vmatprep.subr.bf16.mxu0 0
    %366 = vmatpush2.bf16.msra.mxu0 0
    %367 = vmatprep.subr.bf16.mxu0 0
    %368 = vmatpush2.bf16.msra.mxu0 0
    %369 = vmatprep.subr.bf16.mxu0 0
    %370 = vmatpush2.bf16.msra.mxu0 0
    %371 = vmatprep.mubr.bf16.mxu0 0
    %372 = vmatmul.mubr.bf16.gmra.mxu0 %v267
    %v373 = vpop.f32.mrf.mxu0
    %v374 = vadd.f32 %v289, %v373
    %v375 = vpop.f32.mrf.mxu0
    %v376 = vpop.f32.mrf.mxu0
    %v377 = vadd.f32 %v289, %v376
    %v378 = vpop.f32.mrf.mxu0
    %379 = vdwg.mxu0
    %v380 = vpack.c.bf16 %v377, %v374
    %v381 = vld [vmem:[%s7] sm:$0xf]
    %v382 = vld [vmem:[%s7 + $0x4] sm:$0xf]
    %v383 = vld [vmem:[%s7 + $0x8] sm:$0xf]
    %v384 = vld [vmem:[%s7 + $0xc] sm:$0xf]
    %v385 = vld [vmem:[%s7 + $0x10] sm:$0xf]
    %v386 = vld [vmem:[%s7 + $0x14] sm:$0xf]
    %v387 = vld [vmem:[%s7 + $0x18] sm:$0xf]
    %v388 = vld [vmem:[%s7 + $0x1c] sm:$0xf]
    %v389 = vld [vmem:[%s7 + $0x20] sm:$0xf]
    %v390 = vld [vmem:[%s7 + $0x24] sm:$0xf]
    %v391 = vld [vmem:[%s7 + $0x28] sm:$0xf]
    %v392 = vld [vmem:[%s7 + $0x2c] sm:$0xf]
    %v393 = vld [vmem:[%s7 + $0x30] sm:$0xf]
    %v394 = vld [vmem:[%s7 + $0x34] sm:$0xf]
    %v395 = vld [vmem:[%s7 + $0x38] sm:$0xf]
    %v396 = vld [vmem:[%s7 + $0x3c] sm:$0xf]
    %v397 = vld [vmem:[%s8] sm:$0x1]
    %v399 = vlaneseq
    %v400 = vshrl.u32 %v399, 7
    %v401 = vsub.s32 0, %v400
    %v402 = vrot.slane %v397, %v401
    %v420 = vunpack.c.l.b16 %v381
    %v421 = vunpack.c.l.b16 %v382
    %v422 = vunpack.c.l.b16 %v383
    %v423 = vunpack.c.l.b16 %v384
    %v424 = vunpack.c.l.b16 %v385
    %v425 = vunpack.c.l.b16 %v386
    %v426 = vunpack.c.l.b16 %v387
    %v427 = vunpack.c.l.b16 %v388
    %v428 = vunpack.c.l.b16 %v389
    %v429 = vunpack.c.l.b16 %v390
    %v430 = vunpack.c.l.b16 %v391
    %v431 = vunpack.c.l.b16 %v392
    %v432 = vunpack.c.l.b16 %v393
    %v433 = vunpack.c.l.b16 %v394
    %v434 = vunpack.c.l.b16 %v395
    %v435 = vunpack.c.l.b16 %v396
    %v436 = vpack.c.b16 %v421, %v420
    %v437 = vpack.c.b16 %v423, %v422
    %v438 = vpack.c.b16 %v425, %v424
    %v439 = vpack.c.b16 %v427, %v426
    %v440 = vpack.c.b16 %v429, %v428
    %v441 = vpack.c.b16 %v431, %v430
    %v442 = vpack.c.b16 %v433, %v432
    %v443 = vpack.c.b16 %v435, %v434
    %452 = vmatprep.subr.bf16.mxu0 0
    %453 = vmatpush1.bf16.msra.mxu0 %v443
    %454 = vmatprep.subr.bf16.mxu0 0
    %455 = vmatpush1.bf16.msra.mxu0 %v442
    %456 = vmatprep.subr.bf16.mxu0 0
    %457 = vmatpush1.bf16.msra.mxu0 %v441
    %458 = vmatprep.subr.bf16.mxu0 0
    %459 = vmatpush1.bf16.msra.mxu0 %v440
    %460 = vmatprep.subr.bf16.mxu0 0
    %461 = vmatpush1.bf16.msra.mxu0 %v439
    %462 = vmatprep.subr.bf16.mxu0 0
    %463 = vmatpush1.bf16.msra.mxu0 %v438
    %464 = vmatprep.subr.bf16.mxu0 0
    %465 = vmatpush1.bf16.msra.mxu0 %v437
    %466 = vmatprep.subr.bf16.mxu0 0
    %467 = vmatpush1.bf16.msra.mxu0 %v436
    %468 = vmatprep.subr.bf16.mxu0 0
    %469 = vmatpush2.bf16.msra.mxu0 0
    %470 = vmatprep.subr.bf16.mxu0 0
    %471 = vmatpush2.bf16.msra.mxu0 0
    %472 = vmatprep.subr.bf16.mxu0 0
    %473 = vmatpush2.bf16.msra.mxu0 0
    %474 = vmatprep.subr.bf16.mxu0 0
    %475 = vmatpush2.bf16.msra.mxu0 0
    %476 = vmatprep.subr.bf16.mxu0 0
    %477 = vmatpush2.bf16.msra.mxu0 0
    %478 = vmatprep.subr.bf16.mxu0 0
    %479 = vmatpush2.bf16.msra.mxu0 0
    %480 = vmatprep.subr.bf16.mxu0 0
    %481 = vmatpush2.bf16.msra.mxu0 0
    %482 = vmatprep.subr.bf16.mxu0 0
    %483 = vmatpush2.bf16.msra.mxu0 0
    %484 = vmatprep.mubr.bf16.mxu0 0
    %485 = vmatmul.mubr.bf16.gmra.mxu0 %v380
    %v486 = vpop.f32.mrf.mxu0
    %v487 = vadd.f32 %v402, %v486
    %v488 = vpop.f32.mrf.mxu0
    %v489 = vpop.f32.mrf.mxu0
    %v490 = vadd.f32 %v402, %v489
    %v491 = vpop.f32.mrf.mxu0
    %492 = vdwg.mxu0
    %493 = vst [vmem:[#allocation2] sm:$0xff] %v487
    %494 = vst [vmem:[#allocation2 + $0x8] sm:$0xff] %v490
    // Predicated region
    $region38: #{_projector_forward_2d.1} parent=1 // pred_check
      _
    $region39: #{_projector_forward_2d.1} parent=1 // pred_check_branch
      %496 = sbr.rel (0) target = $region41
    $region40: #{_projector_forward_2d.1} parent=1 // pred_region
      %s498 = ssub.s32 256, 256
      %499 = vsyncadd [#allocation3], %s498
      %s500 = sshll.u32 [#allocation2], 4
      %s501 = int_to_ptr.vmem [resolvable:$true] %s500
      %506 = dma.vmem_to_hbm [thread:$0]  %s501, 256, %s9, [#allocation3], 128, 128, 8
    $region41: #{_projector_forward_2d.1} parent=1 // pred_fallthru
      _
    // Predicated region
    $region42: #{_projector_forward_2d.1} parent=1 // pred_check
      _
    $region43: #{_projector_forward_2d.1} parent=1 // pred_check_branch
      %508 = sbr.rel (0) target = $region45
    $region44: #{_projector_forward_2d.1} parent=1 // pred_region
      %509 = dma.done [#allocation3], 256
    $region45: #{_projector_forward_2d.1} parent=1 // pred_fallthru
      _
    %510 = vsyncpa [#allocation3], 1

</llo_original>
